<compile_context>
chip_gen: v7x
topology: tpu7x:2x2x1
jax: 0.10.0
libtpu: 0.0.40
codegen_flags: <defaults>
</compile_context>

<pallas_src>
import functools

import jax
import jax.numpy as jnp
from jax.experimental import pallas as pl
from jax.experimental.pallas import tpu as pltpu


def _patch_nce_kernel(a_ref, b_ref, o_ref, m_ref, l_ref, pos_ref, *,
                      tau, mxu_dtype):
    # a_ref: (TQ, dim) queries; b_ref: (dim, TK) keys (pre-transposed).
    # o_ref: (TQ, 1) per-row loss; m/l/pos: (TQ, 1) f32 running accumulators.
    qi = pl.program_id(1)
    ki = pl.program_id(2)
    nk = pl.num_programs(2)
    tq = a_ref.shape[0]
    tk = b_ref.shape[1]

    inv_tau = jnp.float32(1.0 / tau)
    # torch masked_fill_(diag, -10.0) happens BEFORE the /tau in the reference.
    masked_logit = jnp.float32(-10.0) * inv_tau

    @pl.when(ki == 0)
    def _init():
        # The masked diagonal entry (-10/tau) is part of every row's logit
        # set, so it is a valid (reference-matching) seed for the running max
        # and keeps every exp() argument <= 0.
        m_ref[...] = jnp.full(m_ref.shape, masked_logit, jnp.float32)
        l_ref[...] = jnp.zeros(l_ref.shape, jnp.float32)
        pos_ref[...] = jnp.zeros(pos_ref.shape, jnp.float32)

    # Fold 1/tau into the small A tile in the MXU operand dtype: O(TQ*dim)
    # VALU work instead of O(TQ*TK) on the logits, no f32 round-trip for bf16.
    a_s = a_ref[...].astype(mxu_dtype) * jnp.asarray(1.0 / tau, mxu_dtype)
    sim = jnp.dot(a_s, b_ref[...].astype(mxu_dtype),
                  preferred_element_type=jnp.float32)          # (TQ, TK) / tau

    # Online logsumexp over the key axis on the UNMASKED sim:
    #   * sim's diagonal IS the positive logit, which the reference also puts
    #     in the softmax denominator (the l_pos column),
    #   * the masked -10/tau diagonal logit is covered by the m seed above and
    #     the finalize below,
    # so no per-element diagonal select is needed in the hot loop.
    m_prev = m_ref[...]
    m_new = jnp.maximum(m_prev, jnp.max(sim, axis=-1, keepdims=True))
    p_sum = jnp.sum(jnp.exp(sim - m_new), axis=-1, keepdims=True)
    l_ref[...] = jnp.exp(m_prev - m_new) * l_ref[...] + p_sum
    m_ref[...] = m_new

    # The positive logit of query row r sits at column (r + offset) of the
    # single key tile that contains this query tile's diagonal (TQ | TK).
    offset = qi * tq - ki * tk
    @pl.when(jnp.logical_and(offset >= 0, offset < tk))
    def _grab_positive():
        rows = jax.lax.broadcasted_iota(jnp.int32, (tq, tk), 0)
        cols = jax.lax.broadcasted_iota(jnp.int32, (tq, tk), 1)
        diag = cols == rows + offset
        pos_ref[...] = jnp.sum(jnp.where(diag, sim, 0.0), axis=-1,
                               keepdims=True)

    @pl.when(ki == nk - 1)
    def _finalize():
        m = m_ref[...]
        pos = pos_ref[...]
        # denominator = sum_j exp(sim_ij - m)   (diag term == exp(pos - m))
        #             + exp(-10/tau - m)        (the masked diagonal logit)
        denom = l_ref[...] + jnp.exp(masked_logit - m)
        # CrossEntropyLoss(reduction='none'), target = positive column.
        o_ref[...] = m + jnp.log(denom) - pos


def _vmem_capacity_bytes():
    try:
        return int(pltpu.get_tpu_info().vmem_capacity_bytes)
    except Exception:
        return 64 << 20          # conservative fallback: v7x physical VMEM


def _choose_tiles(B, n_patch, dim, itemsize, vmem_budget):
    """Pick (TQ, TK) with TQ | TK | n_patch, layout-legal and VMEM-fitting."""
    def step_bytes(tq, tk):
        return (2 * (tq + tk) * dim * itemsize    # A, B windows (double-buffered)
                + 2 * tq * 4 + 3 * tq * 4         # out window + m/l/pos scratch
                + 4 * tq * tk * 4)                # f32 sim / exp temporaries

    # Key tiles: lane-dense (multiple of 128) divisors of n_patch, or the full
    # key axis; prefer the largest <= 1024 that fits (fewer online steps).
    tk_cands = [d for d in range(n_patch, 0, -1)
                if n_patch % d == 0 and (d % 128 == 0 or d == n_patch)]
    tk_cands.sort(key=lambda d: (d > 1024, -d))
    for tk in tk_cands:
        # Query tiles must divide the key tile (so each query tile's diagonal
        # lies in exactly one key tile) and respect the sublane constraint.
        tq_cands = [t for t in range(tk, 0, -1)
                    if tk % t == 0 and (t % 8 == 0 or t == n_patch)]
        fitting = [t for t in tq_cands if step_bytes(t, tk) <= vmem_budget]
        if not fitting:
            continue
        for t in fitting:                       # largest first
            if B * (n_patch // t) >= 2:         # keep both v7x TensorCores busy
                return t, tk
        return fitting[0], tk
    return n_patch, n_patch


def patch_nce_loss(proj_A, proj_B, batch_size, *, tau=0.07,
                   all_negatives_from_minibatch=False, matmul_dtype=None,
                   tile_q=None, tile_k=None):
    bp, dim = proj_A.shape
    B = 1 if all_negatives_from_minibatch else int(batch_size)
    assert bp % B == 0, (bp, B)
    n_patch = bp // B

    if matmul_dtype is None:
        # bf16 inputs hit the MXU natively; the f32 default keeps
        # reference-grade accuracy (pass jnp.bfloat16 to trade accuracy for
        # ~3-4x MXU throughput when dim is large).
        matmul_dtype = proj_A.dtype
    matmul_dtype = jnp.dtype(matmul_dtype)
    itemsize = jnp.dtype(proj_A.dtype).itemsize

    # Chip-aware VMEM budgeting: ~75% of physical VMEM as the compiler limit,
    # ~80% of that for the tile chooser (headroom for compiler scratch).
    vmem_limit = int(_vmem_capacity_bytes() * 0.75)
    tq, tk = _choose_tiles(B, n_patch, dim, itemsize, int(vmem_limit * 0.8))
    if tile_q is not None:
        tq = int(tile_q)
    if tile_k is not None:
        tk = int(tile_k)
    assert n_patch % tk == 0 and tk % tq == 0, (n_patch, tq, tk)
    n_q, n_k = n_patch // tq, n_patch // tk

    # Native-dtype pass-through (bf16 halves HBM->VMEM bytes).  B is
    # pre-transposed once in HBM so the kernel RHS is (dim, n_patch).
    a = proj_A.reshape(B, n_patch, dim)
    b = jnp.transpose(proj_B.reshape(B, n_patch, dim), (0, 2, 1))

    cost = pl.CostEstimate(
        flops=2 * B * n_patch * n_patch * dim,
        transcendentals=B * n_patch * (n_patch + n_k + 1),
        bytes_accessed=bp * dim * itemsize * (1 + n_q) + bp * 4)

    out = pl.pallas_call(
        functools.partial(_patch_nce_kernel, tau=float(tau),
                          mxu_dtype=matmul_dtype),
        out_shape=jax.ShapeDtypeStruct((B, n_patch, 1), jnp.float32),
        grid=(B, n_q, n_k),
        in_specs=[
            pl.BlockSpec((None, tq, dim), lambda bi, qi, ki: (bi, qi, 0)),
            pl.BlockSpec((None, dim, tk), lambda bi, qi, ki: (bi, 0, ki)),
        ],
        out_specs=pl.BlockSpec((None, tq, 1), lambda bi, qi, ki: (bi, qi, 0)),
        scratch_shapes=[pltpu.VMEM((tq, 1), jnp.float32),   # running max m
                        pltpu.VMEM((tq, 1), jnp.float32),   # running sum l
                        pltpu.VMEM((tq, 1), jnp.float32)],  # positive logit
        compiler_params=pltpu.CompilerParams(
            dimension_semantics=("parallel", "parallel", "arbitrary"),
            vmem_limit_bytes=vmem_limit),
        cost_estimate=cost,
    )(a, b)

    return out.reshape(bp)


def _reference_loss(proj_A, proj_B, batch_size, tau=0.07):
    # Pure-JAX reference mirroring the PyTorch forward exactly (f32).
    a = proj_A.astype(jnp.float32)
    b = proj_B.astype(jnp.float32)
    bp, dim = a.shape
    l_pos = jnp.sum(a * b, axis=-1, keepdims=True)                    # (bp, 1)
    n_patch = bp // batch_size
    av = a.reshape(batch_size, n_patch, dim)
    bv = b.reshape(batch_size, n_patch, dim)
    l_neg = jnp.einsum("bpd,bqd->bpq", av, bv,
                       precision=jax.lax.Precision.HIGHEST)           # (B,n,n)
    eye = jnp.eye(n_patch, dtype=bool)[None]
    l_neg = jnp.where(eye, -10.0, l_neg).reshape(bp, n_patch)
    out = jnp.concatenate([l_pos, l_neg], axis=1) / tau
    return jax.nn.logsumexp(out, axis=1) - out[:, 0]


if __name__ == "__main__":
    key = jax.random.PRNGKey(0)
    k1, k2, k3, k4, k5, k6 = jax.random.split(key, 6)

    # Case 1: small module-implied shapes (B=2, n_patch=64, dim=32), f32.
    B1, n1, d1 = 2, 64, 32
    a1 = jax.random.normal(k1, (B1 * n1, d1), dtype=jnp.float32)
    b1 = jax.random.normal(k2, (B1 * n1, d1), dtype=jnp.float32)
    out1 = jax.block_until_ready(patch_nce_loss(a1, b1, B1, tau=0.07))
    ref1 = _reference_loss(a1, b1, B1, tau=0.07)
    assert out1.shape == (B1 * n1,)
    assert jnp.allclose(out1, ref1, rtol=2e-3, atol=5e-2), \
        float(jnp.max(jnp.abs(out1 - ref1)))

    # Case 2: lane-dense n_patch=128, B=4, f32.
    B2, n2, d2 = 4, 128, 64
    a2 = jax.random.normal(k3, (B2 * n2, d2), dtype=jnp.float32)
    b2 = jax.random.normal(k4, (B2 * n2, d2), dtype=jnp.float32)
    out2 = jax.block_until_ready(patch_nce_loss(a2, b2, B2, tau=0.07))
    ref2 = _reference_loss(a2, b2, B2, tau=0.07)
    assert jnp.allclose(out2, ref2, rtol=2e-3, atol=5e-2), \
        float(jnp.max(jnp.abs(out2 - ref2)))

    # Case 3: bf16 activations straight to the MXU (f32 accumulate / softmax).
    a3 = a2.astype(jnp.bfloat16)
    b3 = b2.astype(jnp.bfloat16)
    out3 = jax.block_until_ready(patch_nce_loss(a3, b3, B2, tau=0.07))
    ref3 = _reference_loss(a3, b3, B2, tau=0.07)
    assert jnp.allclose(out3, ref3, rtol=5e-2, atol=2.0), \
        float(jnp.max(jnp.abs(out3 - ref3)))

    # Case 4: all_negatives_from_minibatch=True -> B folds to 1; the query
    # axis is split so the grid still exposes 2 "parallel" steps.
    out4 = jax.block_until_ready(
        patch_nce_loss(a1, b1, B1, tau=0.07, all_negatives_from_minibatch=True))
    ref4 = _reference_loss(a1, b1, 1, tau=0.07)
    assert jnp.allclose(out4, ref4, rtol=2e-3, atol=5e-2), \
        float(jnp.max(jnp.abs(out4 - ref4)))

    # Case 5: exercise the multi-step online-logsumexp path (key-axis tiling
    # with TQ < TK): n_patch=256 forced to (TQ, TK) = (64, 128) -> grid (2,4,2).
    B5, n5, d5 = 2, 256, 32
    a5 = jax.random.normal(k5, (B5 * n5, d5), dtype=jnp.float32)
    b5 = jax.random.normal(k6, (B5 * n5, d5), dtype=jnp.float32)
    out5 = jax.block_until_ready(
        patch_nce_loss(a5, b5, B5, tau=0.07, tile_q=64, tile_k=128))
    ref5 = _reference_loss(a5, b5, B5, tau=0.07)
    assert jnp.allclose(out5, ref5, rtol=2e-3, atol=5e-2), \
        float(jnp.max(jnp.abs(out5 - ref5)))

    print("KERNEL_OK")
</pallas_src>

<mosaic_0001>
module attributes {stable_mosaic.version = 11 : i64} {
  func.func @_patch_nce_kernel(%arg0: i32, %arg1: i32, %arg2: i32, %arg3: memref<1x64x32xf32, #tpu.memory_space<vmem>>, %arg4: memref<1x32x64xf32, #tpu.memory_space<vmem>>, %arg5: memref<1x64x1xf32, #tpu.memory_space<vmem>>, %arg6: memref<64x1xf32, #tpu.memory_space<vmem>>, %arg7: memref<64x1xf32, #tpu.memory_space<vmem>>, %arg8: memref<64x1xf32, #tpu.memory_space<vmem>>) attributes {dimension_semantics = [#tpu.dimension_semantics<parallel>, #tpu.dimension_semantics<parallel>, #tpu.dimension_semantics<arbitrary>], iteration_bounds = array<i64: 2, 1, 1>, scalar_prefetch = 0 : i64, scratch_operands = 3 : i64, tpu.core_type = #tpu.core_type<tc>, window_params = [{transform_indices = @transform_0, window_bounds = array<i64: 1, 64, 32>}, {transform_indices = @transform_1, window_bounds = array<i64: 1, 32, 64>}, {transform_indices = @transform_2, window_bounds = array<i64: 1, 64, 1>}]} {
    %cst = arith.constant -1.000000e+01 : f32
    %cst_0 = arith.constant 14.2857141 : f32
    %0 = arith.mulf %cst, %cst_0 : f32
    %c0_i32 = arith.constant 0 : i32
    %1 = arith.cmpi eq, %arg2, %c0_i32 : i32
    %2 = arith.extui %1 : i1 to i32
    %c0_i32_1 = arith.constant 0 : i32
    %3 = arith.cmpi ne, %2, %c0_i32_1 : i32
    scf.if %3 {
      %38 = vector.broadcast %0 : f32 to vector<64x1xf32>
      %c0_25 = arith.constant 0 : index
      %c0_26 = arith.constant 0 : index
      %39 = vector.load %arg6[%c0_25, %c0_26] : memref<64x1xf32, #tpu.memory_space<vmem>>, vector<64x1xf32>
      tpu.vector_store %arg6[%c0_25, %c0_26], %38 {strides = array<i32>} : memref<64x1xf32, #tpu.memory_space<vmem>>, vector<64x1xf32>,
      %cst_27 = arith.constant 0.000000e+00 : f32
      %40 = vector.broadcast %cst_27 : f32 to vector<64x1xf32>
      %c0_28 = arith.constant 0 : index
      %c0_29 = arith.constant 0 : index
      %41 = vector.load %arg7[%c0_28, %c0_29] : memref<64x1xf32, #tpu.memory_space<vmem>>, vector<64x1xf32>
      tpu.vector_store %arg7[%c0_28, %c0_29], %40 {strides = array<i32>} : memref<64x1xf32, #tpu.memory_space<vmem>>, vector<64x1xf32>,
      %cst_30 = arith.constant 0.000000e+00 : f32
      %42 = vector.broadcast %cst_30 : f32 to vector<64x1xf32>
      %c0_31 = arith.constant 0 : index
      %c0_32 = arith.constant 0 : index
      %43 = vector.load %arg8[%c0_31, %c0_32] : memref<64x1xf32, #tpu.memory_space<vmem>>, vector<64x1xf32>
      tpu.vector_store %arg8[%c0_31, %c0_32], %42 {strides = array<i32>} : memref<64x1xf32, #tpu.memory_space<vmem>>, vector<64x1xf32>,
    } else {
    }
    %c0 = arith.constant 0 : index
    %c0_2 = arith.constant 0 : index
    %c0_3 = arith.constant 0 : index
    %4 = vector.load %arg3[%c0, %c0_2, %c0_3] : memref<1x64x32xf32, #tpu.memory_space<vmem>>, vector<1x64x32xf32>
    %5 = vector.shape_cast %4 : vector<1x64x32xf32> to vector<64x32xf32>
    %cst_4 = arith.constant 14.2857141 : f32
    %6 = vector.broadcast %cst_4 : f32 to vector<64x32xf32>
    %7 = arith.mulf %5, %6 : vector<64x32xf32>
    %c0_5 = arith.constant 0 : index
    %c0_6 = arith.constant 0 : index
    %c0_7 = arith.constant 0 : index
    %8 = vector.load %arg4[%c0_5, %c0_6, %c0_7] : memref<1x32x64xf32, #tpu.memory_space<vmem>>, vector<1x32x64xf32>
    %9 = vector.shape_cast %8 : vector<1x32x64xf32> to vector<32x64xf32>
    %cst_8 = arith.constant dense<0.000000e+00> : vector<64x64xf32>
    %10 = tpu.matmul %7, %9, %cst_8 {dimension_numbers = #tpu.dot_dimension_numbers<[1], [0], [0], [1], [0, 0, 1, 1], [], []>} : vector<64x32xf32>, vector<32x64xf32>, vector<64x64xf32> -> vector<64x64xf32>
    %c0_9 = arith.constant 0 : index
    %c0_10 = arith.constant 0 : index
    %11 = vector.load %arg6[%c0_9, %c0_10] : memref<64x1xf32, #tpu.memory_space<vmem>>, vector<64x1xf32>
    %cst_11 = arith.constant dense<0xFF800000> : vector<64xf32>
    %12 = vector.multi_reduction <maximumf>, %10, %cst_11 [1] : vector<64x64xf32> to vector<64xf32>
    %13 = vector.shape_cast %12 : vector<64xf32> to vector<64x1xf32>
    %14 = arith.maximumf %11, %13 : vector<64x1xf32>
    %15 = vector.broadcast %14 : vector<64x1xf32> to vector<64x64xf32>
    %16 = arith.subf %10, %15 : vector<64x64xf32>
    %17 = math.exp %16 : vector<64x64xf32>
    %cst_12 = arith.constant dense<0.000000e+00> : vector<64xf32>
    %18 = vector.multi_reduction <add>, %17, %cst_12 [1] : vector<64x64xf32> to vector<64xf32>
    %19 = vector.shape_cast %18 : vector<64xf32> to vector<64x1xf32>
    %20 = arith.subf %11, %14 : vector<64x1xf32>
    %21 = math.exp %20 : vector<64x1xf32>
    %c0_13 = arith.constant 0 : index
    %c0_14 = arith.constant 0 : index
    %22 = vector.load %arg7[%c0_13, %c0_14] : memref<64x1xf32, #tpu.memory_space<vmem>>, vector<64x1xf32>
    %23 = arith.mulf %21, %22 : vector<64x1xf32>
    %24 = arith.addf %23, %19 : vector<64x1xf32>
    %c0_15 = arith.constant 0 : index
    %c0_16 = arith.constant 0 : index
    %25 = vector.load %arg7[%c0_15, %c0_16] : memref<64x1xf32, #tpu.memory_space<vmem>>, vector<64x1xf32>
    tpu.vector_store %arg7[%c0_15, %c0_16], %24 {strides = array<i32>} : memref<64x1xf32, #tpu.memory_space<vmem>>, vector<64x1xf32>,
    %c0_17 = arith.constant 0 : index
    %c0_18 = arith.constant 0 : index
    %26 = vector.load %arg6[%c0_17, %c0_18] : memref<64x1xf32, #tpu.memory_space<vmem>>, vector<64x1xf32>
    tpu.vector_store %arg6[%c0_17, %c0_18], %14 {strides = array<i32>} : memref<64x1xf32, #tpu.memory_space<vmem>>, vector<64x1xf32>,
    %c64_i32 = arith.constant 64 : i32
    %27 = arith.muli %arg1, %c64_i32 : i32
    %c64_i32_19 = arith.constant 64 : i32
    %28 = arith.muli %arg2, %c64_i32_19 : i32
    %29 = arith.subi %27, %28 : i32
    %c0_i32_20 = arith.constant 0 : i32
    %30 = arith.cmpi sge, %29, %c0_i32_20 : i32
    %c64_i32_21 = arith.constant 64 : i32
    %31 = arith.cmpi slt, %29, %c64_i32_21 : i32
    %32 = arith.andi %30, %31 : i1
    %33 = arith.extui %32 : i1 to i32
    %c0_i32_22 = arith.constant 0 : i32
    %34 = arith.cmpi ne, %33, %c0_i32_22 : i32
    scf.if %34 {
      %38 = tpu.iota {dimensions = array<i32: 0>} : vector<64x64xi32>
      %39 = tpu.iota {dimensions = array<i32: 1>} : vector<64x64xi32>
      %40 = vector.broadcast %29 : i32 to vector<64x64xi32>
      %41 = arith.addi %38, %40 : vector<64x64xi32>
      %42 = arith.cmpi eq, %39, %41 : vector<64x64xi32>
      %cst_25 = arith.constant 0.000000e+00 : f32
      %43 = vector.broadcast %cst_25 : f32 to vector<64x64xf32>
      %44 = arith.select %42, %10, %43 : vector<64x64xi1>, vector<64x64xf32>
      %cst_26 = arith.constant dense<0.000000e+00> : vector<64xf32>
      %45 = vector.multi_reduction <add>, %44, %cst_26 [1] : vector<64x64xf32> to vector<64xf32>
      %46 = vector.shape_cast %45 : vector<64xf32> to vector<64x1xf32>
      %c0_27 = arith.constant 0 : index
      %c0_28 = arith.constant 0 : index
      %47 = vector.load %arg8[%c0_27, %c0_28] : memref<64x1xf32, #tpu.memory_space<vmem>>, vector<64x1xf32>
      tpu.vector_store %arg8[%c0_27, %c0_28], %46 {strides = array<i32>} : memref<64x1xf32, #tpu.memory_space<vmem>>, vector<64x1xf32>,
    } else {
    }
    %c0_i32_23 = arith.constant 0 : i32
    %35 = arith.cmpi eq, %arg2, %c0_i32_23 : i32
    %36 = arith.extui %35 : i1 to i32
    %c0_i32_24 = arith.constant 0 : i32
    %37 = arith.cmpi ne, %36, %c0_i32_24 : i32
    scf.if %37 {
      %c0_25 = arith.constant 0 : index
      %c0_26 = arith.constant 0 : index
      %38 = vector.load %arg6[%c0_25, %c0_26] : memref<64x1xf32, #tpu.memory_space<vmem>>, vector<64x1xf32>
      %c0_27 = arith.constant 0 : index
      %c0_28 = arith.constant 0 : index
      %39 = vector.load %arg8[%c0_27, %c0_28] : memref<64x1xf32, #tpu.memory_space<vmem>>, vector<64x1xf32>
      %c0_29 = arith.constant 0 : index
      %c0_30 = arith.constant 0 : index
      %40 = vector.load %arg7[%c0_29, %c0_30] : memref<64x1xf32, #tpu.memory_space<vmem>>, vector<64x1xf32>
      %41 = vector.broadcast %0 : f32 to vector<64x1xf32>
      %42 = arith.subf %41, %38 : vector<64x1xf32>
      %43 = math.exp %42 : vector<64x1xf32>
      %44 = arith.addf %40, %43 : vector<64x1xf32>
      %45 = math.log %44 : vector<64x1xf32>
      %46 = arith.addf %38, %45 : vector<64x1xf32>
      %47 = arith.subf %46, %39 : vector<64x1xf32>
      %c0_31 = arith.constant 0 : index
      %c0_32 = arith.constant 0 : index
      %c0_33 = arith.constant 0 : index
      %48 = vector.load %arg5[%c0_31, %c0_32, %c0_33] : memref<1x64x1xf32, #tpu.memory_space<vmem>>, vector<1x64x1xf32>
      %49 = vector.shape_cast %48 : vector<1x64x1xf32> to vector<64x1xf32>
      %50 = vector.shape_cast %47 : vector<64x1xf32> to vector<1x64x1xf32>
      tpu.vector_store %arg5[%c0_31, %c0_32, %c0_33], %50 {strides = array<i32>} : memref<1x64x1xf32, #tpu.memory_space<vmem>>, vector<1x64x1xf32>,
    } else {
    }
    return
  }
  func.func @transform_0(%arg0: i32, %arg1: i32, %arg2: i32) -> (i32, i32, i32) {
    %c0_i32 = arith.constant 0 : i32
    %c0_i32_0 = arith.constant 0 : i32
    return %arg0, %arg1, %c0_i32 : i32, i32, i32
  }
  func.func @transform_1(%arg0: i32, %arg1: i32, %arg2: i32) -> (i32, i32, i32) {
    %c0_i32 = arith.constant 0 : i32
    %c0_i32_0 = arith.constant 0 : i32
    return %arg0, %c0_i32, %arg2 : i32, i32, i32
  }
  func.func @transform_2(%arg0: i32, %arg1: i32, %arg2: i32) -> (i32, i32, i32) {
    %c0_i32 = arith.constant 0 : i32
    %c0_i32_0 = arith.constant 0 : i32
    return %arg0, %arg1, %c0_i32 : i32, i32, i32
  }
}

</mosaic_0001>

<llo_original>
// kernel: tpu_custom_call.1
$region0: #{tpu_custom_call.1}
  #allocation0 [shape = 'u32[]', space=smem, size = 0x4, offset = 0x4, fixed_abs, tag = 'smem constant byte address 0x4 - core index']
  #allocation1 [shape = 'u32[144,128]{1,0:T(1,128)}', space=vmem, size = 0x12000, scoped, tag = 'internal scratch']
  #allocation2 [shape = 'f32[64,1]{1,0:T(8,128)}', space=vmem, size = 0x8000, scoped, tag = 'scratch operand']
  #allocation3 [shape = 'f32[64,1]{1,0:T(8,128)}', space=vmem, size = 0x8000, scoped, tag = 'scratch operand']
  #allocation4 [shape = 'f32[64,1]{1,0:T(8,128)}', space=vmem, size = 0x8000, scoped, tag = 'scratch operand']
  %s0 = inlined_call_operand.vmem [shape: f32[2,64,32], index: 0, kind: input, shape index: {}]
  %s1 = inlined_call_operand.vmem [shape: f32[2,32,64], index: 1, kind: input, shape index: {}]
  %s2 = inlined_call_operand.vmem [shape: f32[2,64,1], index: 2, kind: output, shape index: {}]
  %s3 = sld [smem:[#allocation0]]
  $region53: #{tpu_custom_call.1} parent=0
    _
  %s5 = ssub.s32 1, %s3
  %s6 = scalar_select 0, %s5, %s3
  loop: start=0, step=1, limit=4
  $region2: #{tpu_custom_call.1} parent=0 // loop_pre_header
    _
  $region3: #{tpu_custom_call.1} parent=0 // loop_header
    %s8 = sphi 0, %s12
    %p9 = scmp.ge.s32.totalorder %s8, 4
    %s15 = sphi 0, %s34
    %s16 = sphi 0, %s30
    %s17 = sphi 0, %s26
    %s18 = sphi 0, %s15
    %s19 = sphi 0, %s16
    %s20 = sphi 0, %s17
    %s21 = sphi 0, %s18
    %s22 = sphi 0, %s19
    %s23 = sphi 0, %s20
    %s39 = sphi 0, %s41
    %s42 = sphi 0, %s39
    %s43 = sphi 0, %s42
    %s59 = sphi 0, %s43
    %s67 = sphi 0, %s69
    %s70 = sphi 0, %s67
    %s71 = sphi 0, %s70
    %s87 = sphi 0, %s71
    %s95 = sphi 0, %s97
    %s98 = sphi 0, %s95
    %s99 = sphi 0, %s98
    %s115 = sphi 0, %s99
  $region4: #{tpu_custom_call.1} parent=0 // loop_header_branch
    %11 = sbr.rel (%p9) target = $region8
  $region5: #{tpu_custom_call.1} parent=0 // loop_body
    %s13 = ssub.s32 %s8, 1
    %s14 = ssub.s32 %s8, 2
    %s24 = sadd.s32 1, %s17
    %p25 = scmp.ge.s32.totalorder %s24, 1
    %s26 = scalar_select %p25, 0, %s24
    %s27 = sadd.s32 1, %s16
    %s28 = scalar_select %p25, %s27, %s16
    %p29 = scmp.ge.s32.totalorder %s28, 1
    %s30 = scalar_select %p29, 0, %s28
    %s31 = sadd.s32 1, %s15
    %s32 = scalar_select %p29, %s31, %s15
    %p33 = scmp.ge.s32.totalorder %s32, 2
    %s34 = scalar_select %p33, 0, %s32
    %s35 = ssub.s32 %s15, %s34
    %s36 = ssub.s32 %s16, %s30
    %s37 = sor.u32 %s35, %s36
    %p38 = scmp.eq.s32.totalorder %s37, 0
    %s40 = sadd.s32 %s39, 1
    %s41 = scalar_select %p38, %s39, %s40
    %p44 = pneg %p38
    %p45 = scmp.eq.s32.totalorder %s8, 1
    %p46 = por %p44, %p45
    %p47 = scmp.ne.s32.totalorder %s39, %s42
    %p48 = scmp.eq.s32.totalorder %s8, 0
    %p49 = por %p47, %p48
    %p50 = scmp.ne.s32.totalorder %s39, %s42
    %p51 = scmp.eq.s32.totalorder %s13, 1
    %p52 = por %p50, %p51
    %p53 = scmp.ne.s32.totalorder %s42, %s43
    %p54 = scmp.eq.s32.totalorder %s13, 0
    %p55 = por %p53, %p54
    %p56 = scmp.ne.s32.totalorder %s42, %s43
    %p57 = scmp.eq.s32.totalorder %s14, 1
    %p58 = por %p56, %p57
    %p60 = scmp.ne.s32.totalorder %s43, %s59
    %p61 = scmp.eq.s32.totalorder %s14, 0
    %p62 = por %p60, %p61
    %s63 = ssub.s32 %s15, %s34
    %s64 = ssub.s32 %s17, %s26
    %s65 = sor.u32 %s63, %s64
    %p66 = scmp.eq.s32.totalorder %s65, 0
    %s68 = sadd.s32 %s67, 1
    %s69 = scalar_select %p66, %s67, %s68
    %p72 = pneg %p66
    %p73 = scmp.eq.s32.totalorder %s8, 1
    %p74 = por %p72, %p73
    %p75 = scmp.ne.s32.totalorder %s67, %s70
    %p76 = scmp.eq.s32.totalorder %s8, 0
    %p77 = por %p75, %p76
    %p78 = scmp.ne.s32.totalorder %s67, %s70
    %p79 = scmp.eq.s32.totalorder %s13, 1
    %p80 = por %p78, %p79
    %p81 = scmp.ne.s32.totalorder %s70, %s71
    %p82 = scmp.eq.s32.totalorder %s13, 0
    %p83 = por %p81, %p82
    %p84 = scmp.ne.s32.totalorder %s70, %s71
    %p85 = scmp.eq.s32.totalorder %s14, 1
    %p86 = por %p84, %p85
    %p88 = scmp.ne.s32.totalorder %s71, %s87
    %p89 = scmp.eq.s32.totalorder %s14, 0
    %p90 = por %p88, %p89
    %s91 = ssub.s32 %s15, %s34
    %s92 = ssub.s32 %s16, %s30
    %s93 = sor.u32 %s91, %s92
    %p94 = scmp.eq.s32.totalorder %s93, 0
    %s96 = sadd.s32 %s95, 1
    %s97 = scalar_select %p94, %s95, %s96
    %p100 = pneg %p94
    %p101 = scmp.eq.s32.totalorder %s8, 1
    %p102 = por %p100, %p101
    %p103 = scmp.ne.s32.totalorder %s95, %s98
    %p104 = scmp.eq.s32.totalorder %s8, 0
    %p105 = por %p103, %p104
    %p106 = scmp.ne.s32.totalorder %s95, %s98
    %p107 = scmp.eq.s32.totalorder %s13, 1
    %p108 = por %p106, %p107
    %p109 = scmp.ne.s32.totalorder %s98, %s99
    %p110 = scmp.eq.s32.totalorder %s13, 0
    %p111 = por %p109, %p110
    %p112 = scmp.ne.s32.totalorder %s98, %s99
    %p113 = scmp.eq.s32.totalorder %s14, 1
    %p114 = por %p112, %p113
    %p116 = scmp.ne.s32.totalorder %s99, %s115
    %p117 = scmp.eq.s32.totalorder %s14, 0
    %p118 = por %p116, %p117
    %p119 = scmp.le.s32.totalorder 1, %s8
    %p120 = scmp.lt.s32.totalorder %s8, 3
    %p121 = pnand %p119, %p120
    %p122 = pneg %p121
    // Predicated region
    $region9: #{tpu_custom_call.1} parent=5 // pred_check
      _
    $region10: #{tpu_custom_call.1} parent=5 // pred_check_branch
      %124 = sbr.rel (%p121) target = $region12
    $region11: #{tpu_custom_call.1} parent=5 // pred_region
      %s125 = ssub.s32 %s8, 1
    $region12: #{tpu_custom_call.1} parent=5 // pred_fallthru
      _
    %p126 = scmp.lt.s32.totalorder %s8, 2
    // Predicated region
    $region13: #{tpu_custom_call.1} parent=5 // pred_check
      %p127 = pneg %p126
    $region14: #{tpu_custom_call.1} parent=5 // pred_check_branch
      %129 = sbr.rel (%p127) target = $region16
    $region15: #{tpu_custom_call.1} parent=5 // pred_region
      // Predicated region
      $region17: #{tpu_custom_call.1} parent=15 // pred_check
        %p130 = pneg %p49
      $region18: #{tpu_custom_call.1} parent=15 // pred_check_branch
        %132 = sbr.rel (%p130) target = $region20
      $region19: #{tpu_custom_call.1} parent=15 // pred_region
        %s133 = smul.u32 8, %s16
        %p134 = scmp.lt.s32.totalorder %s15, 1
        %s135 = scalar_select %p134, %s15, 1
        %p136 = scmp.lt.s32.totalorder %s133, 7
        %s137 = scalar_select %p136, %s133, 7
        %s138 = smul.addr %s135, 8
        %s139 = sadd.s32 %s137, %s138
        %s140 = smul.addr %s139, 8
        %s141 = scalar_lea.vmem %s0, %s140
        %s142 = smul.u32 8, %s16
      $region20: #{tpu_custom_call.1} parent=15 // pred_fallthru
        _
      // Predicated region
      $region21: #{tpu_custom_call.1} parent=15 // pred_check
        %p143 = pneg %p77
      $region22: #{tpu_custom_call.1} parent=15 // pred_check_branch
        %145 = sbr.rel (%p143) target = $region24
      $region23: #{tpu_custom_call.1} parent=15 // pred_region
        %p146 = scmp.lt.s32.totalorder %s15, 1
        %s147 = scalar_select %p146, %s15, 1
        %p148 = scmp.lt.s32.totalorder %s17, 0
        %s149 = scalar_select %p148, %s17, 0
        %s150 = smul.addr %s147, 4
        %s151 = sadd.s32 %s149, %s150
        %s152 = smul.addr %s151, 8
        %s153 = scalar_lea.vmem %s1, %s152
      $region24: #{tpu_custom_call.1} parent=15 // pred_fallthru
        _
    $region16: #{tpu_custom_call.1} parent=5 // pred_fallthru
      _
    %p154 = scmp.le.s32.totalorder 1, %s8
    %p155 = scmp.lt.s32.totalorder %s8, 3
    %p156 = pnand %p154, %p155
    %p157 = pneg %p156
    // Predicated region
    $region25: #{tpu_custom_call.1} parent=5 // pred_check
      _
    $region26: #{tpu_custom_call.1} parent=5 // pred_check_branch
      %159 = sbr.rel (%p156) target = $region28
    $region27: #{tpu_custom_call.1} parent=5 // pred_region
      %s160 = ssub.s32 %s8, 1
      %s161 = smul.u32 8, %s19
      %p162 = scmp.lt.s32.totalorder %s18, 1
      %s163 = scalar_select %p162, %s18, 1
      %p164 = scmp.lt.s32.totalorder %s161, 7
      %s165 = scalar_select %p164, %s161, 7
      %s166 = smul.addr %s163, 8
      %s167 = sadd.s32 %s165, %s166
      %s168 = smul.addr %s167, 8
      %s169 = scalar_lea.vmem %s0, %s168
      %p170 = pneg %p55
      %p171 = pneg %p52
      %p172 = scmp.lt.s32.totalorder %s18, 1
      %s173 = scalar_select %p172, %s18, 1
      %p174 = scmp.lt.s32.totalorder %s20, 0
      %s175 = scalar_select %p174, %s20, 0
      %s176 = smul.addr %s173, 4
      %s177 = sadd.s32 %s175, %s176
      %s178 = smul.addr %s177, 8
      %s179 = scalar_lea.vmem %s1, %s178
      %p180 = pneg %p83
      %p181 = pneg %p80
      %p182 = pneg %p111
      %p183 = pneg %p108
      %s184 = smul.u32 8, %s19
      %p185 = scmp.lt.s32.totalorder %s18, 1
      %s186 = scalar_select %p185, %s18, 1
      %p187 = scmp.lt.s32.totalorder %s184, 7
      %s188 = scalar_select %p187, %s184, 7
      %s189 = smul.addr %s186, 8
      %s190 = sadd.s32 %s188, %s189
      %s191 = smul.addr %s190, 8
      %s192 = scalar_lea.vmem %s2, %s191
      %s193 = smul.u32 8, %s19
      %p194 = scmp.lt.s32.totalorder %s18, 1
      %s195 = scalar_select %p194, %s18, 1
      %p196 = scmp.lt.s32.totalorder %s193, 7
      %s197 = scalar_select %p196, %s193, 7
      %s198 = smul.addr %s195, 8
      %s199 = sadd.s32 %s197, %s198
      %s200 = smul.addr %s199, 8
      %s201 = scalar_lea.vmem %s0, %s200
      %s202 = smul.u32 8, %s19
      %p203 = scmp.lt.s32.totalorder %s18, 1
      %s204 = scalar_select %p203, %s18, 1
      %p205 = scmp.lt.s32.totalorder %s20, 0
      %s206 = scalar_select %p205, %s20, 0
      %s207 = smul.addr %s204, 4
      %s208 = sadd.s32 %s206, %s207
      %s209 = smul.addr %s208, 8
      %s210 = scalar_lea.vmem %s1, %s209
      %s211 = smul.u32 8, %s19
      %p212 = scmp.lt.s32.totalorder %s18, 1
      %s213 = scalar_select %p212, %s18, 1
      %p214 = scmp.lt.s32.totalorder %s211, 7
      %s215 = scalar_select %p214, %s211, 7
      %s216 = smul.addr %s213, 8
      %s217 = sadd.s32 %s215, %s216
      %s218 = smul.addr %s217, 8
      %s219 = scalar_lea.vmem %s2, %s218
      %s220 = smul.u32 8, %s19
      %p221 = scmp.eq.s32.totalorder %s20, 0
      // Predicated region
      $region29: #{tpu_custom_call.1} parent=27 // pred_check
        %p222 = pneg %p221
      $region30: #{tpu_custom_call.1} parent=27 // pred_check_branch
        %224 = sbr.rel (%p222) target = $region32
      $region31: #{tpu_custom_call.1} parent=27 // pred_region
        %vm225 = vcmask 7168
        %226 = vst.msk [vmem:[#allocation2] sm:$0xff] %vm225, -142.85715
        %227 = vst.msk [vmem:[#allocation2 + $0x8] sm:$0xff] %vm225, -142.85715
        %228 = vst.msk [vmem:[#allocation2 + $0x10] sm:$0xff] %vm225, -142.85715
        %229 = vst.msk [vmem:[#allocation2 + $0x18] sm:$0xff] %vm225, -142.85715
        %230 = vst.msk [vmem:[#allocation2 + $0x20] sm:$0xff] %vm225, -142.85715
        %231 = vst.msk [vmem:[#allocation2 + $0x28] sm:$0xff] %vm225, -142.85715
        %232 = vst.msk [vmem:[#allocation2 + $0x30] sm:$0xff] %vm225, -142.85715
        %233 = vst.msk [vmem:[#allocation2 + $0x38] sm:$0xff] %vm225, -142.85715
        %234 = vst.msk [vmem:[#allocation3] sm:$0xff] %vm225, 0.0
        %235 = vst.msk [vmem:[#allocation3 + $0x8] sm:$0xff] %vm225, 0.0
        %236 = vst.msk [vmem:[#allocation3 + $0x10] sm:$0xff] %vm225, 0.0
        %237 = vst.msk [vmem:[#allocation3 + $0x18] sm:$0xff] %vm225, 0.0
        %238 = vst.msk [vmem:[#allocation3 + $0x20] sm:$0xff] %vm225, 0.0
        %239 = vst.msk [vmem:[#allocation3 + $0x28] sm:$0xff] %vm225, 0.0
        %240 = vst.msk [vmem:[#allocation3 + $0x30] sm:$0xff] %vm225, 0.0
        %241 = vst.msk [vmem:[#allocation3 + $0x38] sm:$0xff] %vm225, 0.0
        %242 = vst.msk [vmem:[#allocation4] sm:$0xff] %vm225, 0.0
        %243 = vst.msk [vmem:[#allocation4 + $0x8] sm:$0xff] %vm225, 0.0
        %244 = vst.msk [vmem:[#allocation4 + $0x10] sm:$0xff] %vm225, 0.0
        %245 = vst.msk [vmem:[#allocation4 + $0x18] sm:$0xff] %vm225, 0.0
        %246 = vst.msk [vmem:[#allocation4 + $0x20] sm:$0xff] %vm225, 0.0
        %247 = vst.msk [vmem:[#allocation4 + $0x28] sm:$0xff] %vm225, 0.0
        %248 = vst.msk [vmem:[#allocation4 + $0x30] sm:$0xff] %vm225, 0.0
        %249 = vst.msk [vmem:[#allocation4 + $0x38] sm:$0xff] %vm225, 0.0
      $region32: #{tpu_custom_call.1} parent=27 // pred_fallthru
        _
      %v250 = vld [vmem:[%s201] sm:$0xff]
      %v251 = vld [vmem:[%s201 + $0x8] sm:$0xff]
      %v252 = vld [vmem:[%s201 + $0x10] sm:$0xff]
      %v253 = vld [vmem:[%s201 + $0x18] sm:$0xff]
      %v254 = vld [vmem:[%s201 + $0x20] sm:$0xff]
      %v255 = vld [vmem:[%s201 + $0x28] sm:$0xff]
      %v256 = vld [vmem:[%s201 + $0x30] sm:$0xff]
      %v257 = vld [vmem:[%s201 + $0x38] sm:$0xff]
      %v258 = vmul.f32 %v250, 14.285714
      %v259 = vmul.f32 %v251, 14.285714
      %v260 = vmul.f32 %v252, 14.285714
      %v261 = vmul.f32 %v253, 14.285714
      %v262 = vmul.f32 %v254, 14.285714
      %v263 = vmul.f32 %v255, 14.285714
      %v264 = vmul.f32 %v256, 14.285714
      %v265 = vmul.f32 %v257, 14.285714
      %v266 = vld [vmem:[%s210] sm:$0xff]
      %v267 = vld [vmem:[%s210 + $0x8] sm:$0xff]
      %v268 = vld [vmem:[%s210 + $0x10] sm:$0xff]
      %v269 = vld [vmem:[%s210 + $0x18] sm:$0xff]
      %vm270 = vcmask 261120
      %v272 = vsel %vm270, %v258, 0
      %v275 = vsel %vm270, %v259, 0
      %v278 = vsel %vm270, %v260, 0
      %v281 = vsel %vm270, %v261, 0
      %v284 = vsel %vm270, %v262, 0
      %v287 = vsel %vm270, %v263, 0
      %v290 = vsel %vm270, %v264, 0
      %v293 = vsel %vm270, %v265, 0
      %295 = vmatprep.subr.mxu0 0.0
      %296 = vmatpush1.msra.mxu0 %v266
      %297 = vmatprep.subr.mxu0 0.0
      %298 = vmatpush1.msra.mxu0 %v267
      %299 = vmatprep.subr.mxu0 0.0
      %300 = vmatpush1.msra.mxu0 %v268
      %301 = vmatprep.subr.mxu0 0.0
      %302 = vmatpush1.msra.mxu0 %v269
      %303 = vmatprep.subr.mxu0 0.0
      %304 = vmatpush1.msra.mxu0 0.0
      %305 = vmatprep.subr.mxu0 0.0
      %306 = vmatpush1.msra.mxu0 0.0
      %307 = vmatprep.subr.mxu0 0.0
      %308 = vmatpush1.msra.mxu0 0.0
      %309 = vmatprep.subr.mxu0 0.0
      %310 = vmatpush1.msra.mxu0 0.0
      %311 = vmatprep.subr.mxu0 0.0
      %312 = vmatpush1.msra.mxu0 0.0
      %313 = vmatprep.subr.mxu0 0.0
      %314 = vmatpush1.msra.mxu0 0.0
      %315 = vmatprep.subr.mxu0 0.0
      %316 = vmatpush1.msra.mxu0 0.0
      %317 = vmatprep.subr.mxu0 0.0
      %318 = vmatpush1.msra.mxu0 0.0
      %319 = vmatprep.subr.mxu0 0.0
      %320 = vmatpush1.msra.mxu0 0.0
      %321 = vmatprep.subr.mxu0 0.0
      %322 = vmatpush1.msra.mxu0 0.0
      %323 = vmatprep.subr.mxu0 0.0
      %324 = vmatpush1.msra.mxu0 0.0
      %325 = vmatprep.subr.mxu0 0.0
      %326 = vmatpush1.msra.mxu0 0.0
      %327 = vmatprep.subr.mxu0 0.0
      %328 = vmatpush1.msra.mxu0 0.0
      %329 = vmatprep.subr.mxu0 0.0
      %330 = vmatpush1.msra.mxu0 0.0
      %331 = vmatprep.subr.mxu0 0.0
      %332 = vmatpush1.msra.mxu0 0.0
      %333 = vmatprep.subr.mxu0 0.0
      %334 = vmatpush1.msra.mxu0 0.0
      %335 = vmatprep.subr.mxu0 0.0
      %336 = vmatpush1.msra.mxu0 0.0
      %337 = vmatprep.subr.mxu0 0.0
      %338 = vmatpush1.msra.mxu0 0.0
      %339 = vmatprep.subr.mxu0 0.0
      %340 = vmatpush1.msra.mxu0 0.0
      %341 = vmatprep.subr.mxu0 0.0
      %342 = vmatpush1.msra.mxu0 0.0
      %343 = vmatprep.subr.mxu0 0.0
      %344 = vmatpush1.msra.mxu0 0.0
      %345 = vmatprep.subr.mxu0 0.0
      %346 = vmatpush1.msra.mxu0 0.0
      %347 = vmatprep.subr.mxu0 0.0
      %348 = vmatpush1.msra.mxu0 0.0
      %349 = vmatprep.subr.mxu0 0.0
      %350 = vmatpush1.msra.mxu0 0.0
      %351 = vmatprep.subr.mxu0 0.0
      %352 = vmatpush1.msra.mxu0 0.0
      %353 = vmatprep.subr.mxu0 0.0
      %354 = vmatpush1.msra.mxu0 0.0
      %355 = vmatprep.subr.mxu0 0.0
      %356 = vmatpush1.msra.mxu0 0.0
      %357 = vmatprep.subr.mxu0 0.0
      %358 = vmatpush1.msra.mxu0 0.0
      %359 = vmatprep.mubr.f32.mxu0 0.0
      %360 = vmatmul.mubr.f32.gmra.mrb[0].mxu0 %v272
      %v361 = vpop.f32.mrb[0].mxu0
      %v362 = vadd.f32 0.0, %v361
      %v363 = vpop.f32.mrb[0].mxu0
      %364 = vmatprep.mubr.f32.mxu0 0.0
      %365 = vmatmul.mubr.f32.gmra.mrb[0].mxu0 %v275
      %v366 = vpop.f32.mrb[0].mxu0
      %v367 = vadd.f32 0.0, %v366
      %v368 = vpop.f32.mrb[0].mxu0
      %369 = vmatprep.mubr.f32.mxu0 0.0
      %370 = vmatmul.mubr.f32.gmra.mrb[0].mxu0 %v278
      %v371 = vpop.f32.mrb[0].mxu0
      %v372 = vadd.f32 0.0, %v371
      %v373 = vpop.f32.mrb[0].mxu0
      %374 = vmatprep.mubr.f32.mxu0 0.0
      %375 = vmatmul.mubr.f32.gmra.mrb[0].mxu0 %v281
      %v376 = vpop.f32.mrb[0].mxu0
      %v377 = vadd.f32 0.0, %v376
      %v378 = vpop.f32.mrb[0].mxu0
      %379 = vmatprep.mubr.f32.mxu0 0.0
      %380 = vmatmul.mubr.f32.gmra.mrb[0].mxu0 %v284
      %v381 = vpop.f32.mrb[0].mxu0
      %v382 = vadd.f32 0.0, %v381
      %v383 = vpop.f32.mrb[0].mxu0
      %384 = vmatprep.mubr.f32.mxu0 0.0
      %385 = vmatmul.mubr.f32.gmra.mrb[0].mxu0 %v287
      %v386 = vpop.f32.mrb[0].mxu0
      %v387 = vadd.f32 0.0, %v386
      %v388 = vpop.f32.mrb[0].mxu0
      %389 = vmatprep.mubr.f32.mxu0 0.0
      %390 = vmatmul.mubr.f32.gmra.mrb[0].mxu0 %v290
      %v391 = vpop.f32.mrb[0].mxu0
      %v392 = vadd.f32 0.0, %v391
      %v393 = vpop.f32.mrb[0].mxu0
      %394 = vmatprep.mubr.f32.mxu0 0.0
      %395 = vmatmul.mubr.f32.gmra.mrb[0].mxu0 %v293
      %v396 = vpop.f32.mrb[0].mxu0
      %v397 = vadd.f32 0.0, %v396
      %v398 = vpop.f32.mrb[0].mxu0
      %399 = vdwg.mxu0
      %v400 = vld [vmem:[#allocation2] sm:$0xff]
      %v401 = vld [vmem:[#allocation2 + $0x8] sm:$0xff]
      %v402 = vld [vmem:[#allocation2 + $0x10] sm:$0xff]
      %v403 = vld [vmem:[#allocation2 + $0x18] sm:$0xff]
      %v404 = vld [vmem:[#allocation2 + $0x20] sm:$0xff]
      %v405 = vld [vmem:[#allocation2 + $0x28] sm:$0xff]
      %v406 = vld [vmem:[#allocation2 + $0x30] sm:$0xff]
      %v407 = vld [vmem:[#allocation2 + $0x38] sm:$0xff]
      %vm408 = vcmask 523264
      %v409 = vsel %vm408, %v362, -inf
      %410 = vmax.xlane.f32.xlu0 %v409
      %v411 = vpop.xlane.xlu0 %410
      %v412 = vsel %vm408, %v367, -inf
      %413 = vmax.xlane.f32.xlu0 %v412
      %v414 = vpop.xlane.xlu0 %413
      %v415 = vsel %vm408, %v372, -inf
      %416 = vmax.xlane.f32.xlu0 %v415
      %v417 = vpop.xlane.xlu0 %416
      %v418 = vsel %vm408, %v377, -inf
      %419 = vmax.xlane.f32.xlu0 %v418
      %v420 = vpop.xlane.xlu0 %419
      %v421 = vsel %vm408, %v382, -inf
      %422 = vmax.xlane.f32.xlu0 %v421
      %v423 = vpop.xlane.xlu0 %422
      %v424 = vsel %vm408, %v387, -inf
      %425 = vmax.xlane.f32.xlu0 %v424
      %v426 = vpop.xlane.xlu0 %425
      %v427 = vsel %vm408, %v392, -inf
      %428 = vmax.xlane.f32.xlu0 %v427
      %v429 = vpop.xlane.xlu0 %428
      %v430 = vsel %vm408, %v397, -inf
      %431 = vmax.xlane.f32.xlu0 %v430
      %v432 = vpop.xlane.xlu0 %431
      %v433 = vmax.f32 %v400, %v411
      %v434 = vmax.f32 %v401, %v414
      %v435 = vmax.f32 %v402, %v417
      %v436 = vmax.f32 %v403, %v420
      %v437 = vmax.f32 %v404, %v423
      %v438 = vmax.f32 %v405, %v426
      %v439 = vmax.f32 %v406, %v429
      %v440 = vmax.f32 %v407, %v432
      %442 = vset.pattern.permute.xlu0 0
      %443 = vperm.xlu0 %442, %v433
      %v444 = vpop.permute.xlu0 %443
      %447 = vset.pattern.permute.xlu0 0
      %448 = vperm.xlu0 %447, %v434
      %v449 = vpop.permute.xlu0 %448
      %452 = vset.pattern.permute.xlu0 0
      %453 = vperm.xlu0 %452, %v435
      %v454 = vpop.permute.xlu0 %453
      %457 = vset.pattern.permute.xlu0 0
      %458 = vperm.xlu0 %457, %v436
      %v459 = vpop.permute.xlu0 %458
      %462 = vset.pattern.permute.xlu0 0
      %463 = vperm.xlu0 %462, %v437
      %v464 = vpop.permute.xlu0 %463
      %467 = vset.pattern.permute.xlu0 0
      %468 = vperm.xlu0 %467, %v438
      %v469 = vpop.permute.xlu0 %468
      %472 = vset.pattern.permute.xlu0 0
      %473 = vperm.xlu0 %472, %v439
      %v474 = vpop.permute.xlu0 %473
      %477 = vset.pattern.permute.xlu0 0
      %478 = vperm.xlu0 %477, %v440
      %v479 = vpop.permute.xlu0 %478
      %v481 = vsub.f32 %v362, %v444
      %v482 = vsub.f32 %v367, %v449
      %v483 = vsub.f32 %v372, %v454
      %v484 = vsub.f32 %v377, %v459
      %v485 = vsub.f32 %v382, %v464
      %v486 = vsub.f32 %v387, %v469
      %v487 = vsub.f32 %v392, %v474
      %v488 = vsub.f32 %v397, %v479
      %v489 = vmul.f32 %v481, 1.442695
      %v490 = vpow.pop %v489
      %v491 = vmul.f32 %v482, 1.442695
      %v492 = vpow.pop %v491
      %v493 = vmul.f32 %v483, 1.442695
      %v494 = vpow.pop %v493
      %v495 = vmul.f32 %v484, 1.442695
      %v496 = vpow.pop %v495
      %v497 = vmul.f32 %v485, 1.442695
      %v498 = vpow.pop %v497
      %v499 = vmul.f32 %v486, 1.442695
      %v500 = vpow.pop %v499
      %v501 = vmul.f32 %v487, 1.442695
      %v502 = vpow.pop %v501
      %v503 = vmul.f32 %v488, 1.442695
      %v504 = vpow.pop %v503
      %v505 = vsel %vm408, %v490, 0.0
      %506 = vadd.xlane.f32.xlu0 %v505
      %v507 = vpop.xlane.xlu0 %506
      %v508 = vsel %vm408, %v492, 0.0
      %509 = vadd.xlane.f32.xlu0 %v508
      %v510 = vpop.xlane.xlu0 %509
      %v511 = vsel %vm408, %v494, 0.0
      %512 = vadd.xlane.f32.xlu0 %v511
      %v513 = vpop.xlane.xlu0 %512
      %v514 = vsel %vm408, %v496, 0.0
      %515 = vadd.xlane.f32.xlu0 %v514
      %v516 = vpop.xlane.xlu0 %515
      %v517 = vsel %vm408, %v498, 0.0
      %518 = vadd.xlane.f32.xlu0 %v517
      %v519 = vpop.xlane.xlu0 %518
      %v520 = vsel %vm408, %v500, 0.0
      %521 = vadd.xlane.f32.xlu0 %v520
      %v522 = vpop.xlane.xlu0 %521
      %v523 = vsel %vm408, %v502, 0.0
      %524 = vadd.xlane.f32.xlu0 %v523
      %v525 = vpop.xlane.xlu0 %524
      %v526 = vsel %vm408, %v504, 0.0
      %527 = vadd.xlane.f32.xlu0 %v526
      %v528 = vpop.xlane.xlu0 %527
      %v529 = vsub.f32 %v400, %v433
      %v530 = vsub.f32 %v401, %v434
      %v531 = vsub.f32 %v402, %v435
      %v532 = vsub.f32 %v403, %v436
      %v533 = vsub.f32 %v404, %v437
      %v534 = vsub.f32 %v405, %v438
      %v535 = vsub.f32 %v406, %v439
      %v536 = vsub.f32 %v407, %v440
      %v537 = vmul.f32 %v529, 1.442695
      %v538 = vpow.pop %v537
      %v539 = vmul.f32 %v530, 1.442695
      %v540 = vpow.pop %v539
      %v541 = vmul.f32 %v531, 1.442695
      %v542 = vpow.pop %v541
      %v543 = vmul.f32 %v532, 1.442695
      %v544 = vpow.pop %v543
      %v545 = vmul.f32 %v533, 1.442695
      %v546 = vpow.pop %v545
      %v547 = vmul.f32 %v534, 1.442695
      %v548 = vpow.pop %v547
      %v549 = vmul.f32 %v535, 1.442695
      %v550 = vpow.pop %v549
      %v551 = vmul.f32 %v536, 1.442695
      %v552 = vpow.pop %v551
      %v553 = vld [vmem:[#allocation3] sm:$0xff]
      %v554 = vld [vmem:[#allocation3 + $0x8] sm:$0xff]
      %v555 = vld [vmem:[#allocation3 + $0x10] sm:$0xff]
      %v556 = vld [vmem:[#allocation3 + $0x18] sm:$0xff]
      %v557 = vld [vmem:[#allocation3 + $0x20] sm:$0xff]
      %v558 = vld [vmem:[#allocation3 + $0x28] sm:$0xff]
      %v559 = vld [vmem:[#allocation3 + $0x30] sm:$0xff]
      %v560 = vld [vmem:[#allocation3 + $0x38] sm:$0xff]
      %v561 = vmul.f32 %v538, %v553
      %v562 = vmul.f32 %v540, %v554
      %v563 = vmul.f32 %v542, %v555
      %v564 = vmul.f32 %v544, %v556
      %v565 = vmul.f32 %v546, %v557
      %v566 = vmul.f32 %v548, %v558
      %v567 = vmul.f32 %v550, %v559
      %v568 = vmul.f32 %v552, %v560
      %v569 = vadd.f32 %v561, %v507
      %v570 = vadd.f32 %v562, %v510
      %v571 = vadd.f32 %v563, %v513
      %v572 = vadd.f32 %v564, %v516
      %v573 = vadd.f32 %v565, %v519
      %v574 = vadd.f32 %v566, %v522
      %v575 = vadd.f32 %v567, %v525
      %v576 = vadd.f32 %v568, %v528
      %vm577 = vcmask 7168
      %578 = vst.msk [vmem:[#allocation3] sm:$0xff] %vm577, %v569
      %579 = vst.msk [vmem:[#allocation3 + $0x8] sm:$0xff] %vm577, %v570
      %580 = vst.msk [vmem:[#allocation3 + $0x10] sm:$0xff] %vm577, %v571
      %581 = vst.msk [vmem:[#allocation3 + $0x18] sm:$0xff] %vm577, %v572
      %582 = vst.msk [vmem:[#allocation3 + $0x20] sm:$0xff] %vm577, %v573
      %583 = vst.msk [vmem:[#allocation3 + $0x28] sm:$0xff] %vm577, %v574
      %584 = vst.msk [vmem:[#allocation3 + $0x30] sm:$0xff] %vm577, %v575
      %585 = vst.msk [vmem:[#allocation3 + $0x38] sm:$0xff] %vm577, %v576
      %586 = vst.msk [vmem:[#allocation2] sm:$0xff] %vm577, %v433
      %587 = vst.msk [vmem:[#allocation2 + $0x8] sm:$0xff] %vm577, %v434
      %588 = vst.msk [vmem:[#allocation2 + $0x10] sm:$0xff] %vm577, %v435
      %589 = vst.msk [vmem:[#allocation2 + $0x18] sm:$0xff] %vm577, %v436
      %590 = vst.msk [vmem:[#allocation2 + $0x20] sm:$0xff] %vm577, %v437
      %591 = vst.msk [vmem:[#allocation2 + $0x28] sm:$0xff] %vm577, %v438
      %592 = vst.msk [vmem:[#allocation2 + $0x30] sm:$0xff] %vm577, %v439
      %593 = vst.msk [vmem:[#allocation2 + $0x38] sm:$0xff] %vm577, %v440
      %s594 = smul.u32 %s19, 64
      %s595 = smul.u32 %s20, 64
      %s596 = ssub.s32 %s594, %s595
      %p597 = scmp.ge.s32.totalorder %s596, 0
      %p598 = scmp.lt.s32.totalorder %s596, 64
      %p599 = pnand %p597, %p598
      %p600 = pneg %p599
      // Predicated region
      $region33: #{tpu_custom_call.1} parent=27 // pred_check
        _
      $region34: #{tpu_custom_call.1} parent=27 // pred_check_branch
        %602 = sbr.rel (%p599) target = $region36
      $region35: #{tpu_custom_call.1} parent=27 // pred_region
        %v603 = vlaneseq
        %v604 = vshrl.u32 %v603, 7
        %v605 = vadd.s32 %v604, 8
        %v606 = vadd.s32 %v604, 16
        %v607 = vadd.s32 %v604, 24
        %v608 = vadd.s32 %v604, 32
        %v609 = vadd.s32 %v604, 40
        %v610 = vadd.s32 %v604, 48
        %v611 = vadd.s32 %v604, 56
        %v612 = vlaneseq
        %v613 = vand.u32 %v612, 127
        %v614 = vstv %s596
        %v615 = vadd.s32 %v604, %v614
        %v616 = vadd.s32 %v605, %v614
        %v617 = vadd.s32 %v606, %v614
        %v618 = vadd.s32 %v607, %v614
        %v619 = vadd.s32 %v608, %v614
        %v620 = vadd.s32 %v609, %v614
        %v621 = vadd.s32 %v610, %v614
        %v622 = vadd.s32 %v611, %v614
        %vm623 = vcmp.eq.s32.totalorder %v613, %v615
        %vm624 = vcmp.eq.s32.totalorder %v613, %v616
        %vm625 = vcmp.eq.s32.totalorder %v613, %v617
        %vm626 = vcmp.eq.s32.totalorder %v613, %v618
        %vm627 = vcmp.eq.s32.totalorder %v613, %v619
        %vm628 = vcmp.eq.s32.totalorder %v613, %v620
        %vm629 = vcmp.eq.s32.totalorder %v613, %v621
        %vm630 = vcmp.eq.s32.totalorder %v613, %v622
        %v631 = vsel %vm623, %v362, 0.0
        %v632 = vsel %vm624, %v367, 0.0
        %v633 = vsel %vm625, %v372, 0.0
        %v634 = vsel %vm626, %v377, 0.0
        %v635 = vsel %vm627, %v382, 0.0
        %v636 = vsel %vm628, %v387, 0.0
        %v637 = vsel %vm629, %v392, 0.0
        %v638 = vsel %vm630, %v397, 0.0
        %v639 = vsel %vm408, %v631, 0.0
        %640 = vadd.xlane.f32.xlu0 %v639
        %v641 = vpop.xlane.xlu0 %640
        %v642 = vsel %vm408, %v632, 0.0
        %643 = vadd.xlane.f32.xlu0 %v642
        %v644 = vpop.xlane.xlu0 %643
        %v645 = vsel %vm408, %v633, 0.0
        %646 = vadd.xlane.f32.xlu0 %v645
        %v647 = vpop.xlane.xlu0 %646
        %v648 = vsel %vm408, %v634, 0.0
        %649 = vadd.xlane.f32.xlu0 %v648
        %v650 = vpop.xlane.xlu0 %649
        %v651 = vsel %vm408, %v635, 0.0
        %652 = vadd.xlane.f32.xlu0 %v651
        %v653 = vpop.xlane.xlu0 %652
        %v654 = vsel %vm408, %v636, 0.0
        %655 = vadd.xlane.f32.xlu0 %v654
        %v656 = vpop.xlane.xlu0 %655
        %v657 = vsel %vm408, %v637, 0.0
        %658 = vadd.xlane.f32.xlu0 %v657
        %v659 = vpop.xlane.xlu0 %658
        %v660 = vsel %vm408, %v638, 0.0
        %661 = vadd.xlane.f32.xlu0 %v660
        %v662 = vpop.xlane.xlu0 %661
        %663 = vst.msk [vmem:[#allocation4] sm:$0xff] %vm577, %v641
        %664 = vst.msk [vmem:[#allocation4 + $0x8] sm:$0xff] %vm577, %v644
        %665 = vst.msk [vmem:[#allocation4 + $0x10] sm:$0xff] %vm577, %v647
        %666 = vst.msk [vmem:[#allocation4 + $0x18] sm:$0xff] %vm577, %v650
        %667 = vst.msk [vmem:[#allocation4 + $0x20] sm:$0xff] %vm577, %v653
        %668 = vst.msk [vmem:[#allocation4 + $0x28] sm:$0xff] %vm577, %v656
        %669 = vst.msk [vmem:[#allocation4 + $0x30] sm:$0xff] %vm577, %v659
        %670 = vst.msk [vmem:[#allocation4 + $0x38] sm:$0xff] %vm577, %v662
      $region36: #{tpu_custom_call.1} parent=27 // pred_fallthru
        _
      // Predicated region
      $region37: #{tpu_custom_call.1} parent=27 // pred_check
        %p671 = pneg %p221
      $region38: #{tpu_custom_call.1} parent=27 // pred_check_branch
        %673 = sbr.rel (%p671) target = $region40
      $region39: #{tpu_custom_call.1} parent=27 // pred_region
        %v674 = vld [vmem:[#allocation2] sm:$0xff]
        %v675 = vld [vmem:[#allocation2 + $0x8] sm:$0xff]
        %v676 = vld [vmem:[#allocation2 + $0x10] sm:$0xff]
        %v677 = vld [vmem:[#allocation2 + $0x18] sm:$0xff]
        %v678 = vld [vmem:[#allocation2 + $0x20] sm:$0xff]
        %v679 = vld [vmem:[#allocation2 + $0x28] sm:$0xff]
        %v680 = vld [vmem:[#allocation2 + $0x30] sm:$0xff]
        %v681 = vld [vmem:[#allocation2 + $0x38] sm:$0xff]
        %v682 = vld [vmem:[#allocation4] sm:$0xff]
        %v683 = vld [vmem:[#allocation4 + $0x8] sm:$0xff]
        %v684 = vld [vmem:[#allocation4 + $0x10] sm:$0xff]
        %v685 = vld [vmem:[#allocation4 + $0x18] sm:$0xff]
        %v686 = vld [vmem:[#allocation4 + $0x20] sm:$0xff]
        %v687 = vld [vmem:[#allocation4 + $0x28] sm:$0xff]
        %v688 = vld [vmem:[#allocation4 + $0x30] sm:$0xff]
        %v689 = vld [vmem:[#allocation4 + $0x38] sm:$0xff]
        %v690 = vld [vmem:[#allocation3] sm:$0xff]
        %v691 = vld [vmem:[#allocation3 + $0x8] sm:$0xff]
        %v692 = vld [vmem:[#allocation3 + $0x10] sm:$0xff]
        %v693 = vld [vmem:[#allocation3 + $0x18] sm:$0xff]
        %v694 = vld [vmem:[#allocation3 + $0x20] sm:$0xff]
        %v695 = vld [vmem:[#allocation3 + $0x28] sm:$0xff]
        %v696 = vld [vmem:[#allocation3 + $0x30] sm:$0xff]
        %v697 = vld [vmem:[#allocation3 + $0x38] sm:$0xff]
        %v698 = vsub.f32 -142.85715, %v674
        %v699 = vsub.f32 -142.85715, %v675
        %v700 = vsub.f32 -142.85715, %v676
        %v701 = vsub.f32 -142.85715, %v677
        %v702 = vsub.f32 -142.85715, %v678
        %v703 = vsub.f32 -142.85715, %v679
        %v704 = vsub.f32 -142.85715, %v680
        %v705 = vsub.f32 -142.85715, %v681
        %v706 = vmul.f32 %v698, 1.442695
        %v707 = vpow.pop %v706
        %v708 = vmul.f32 %v699, 1.442695
        %v709 = vpow.pop %v708
        %v710 = vmul.f32 %v700, 1.442695
        %v711 = vpow.pop %v710
        %v712 = vmul.f32 %v701, 1.442695
        %v713 = vpow.pop %v712
        %v714 = vmul.f32 %v702, 1.442695
        %v715 = vpow.pop %v714
        %v716 = vmul.f32 %v703, 1.442695
        %v717 = vpow.pop %v716
        %v718 = vmul.f32 %v704, 1.442695
        %v719 = vpow.pop %v718
        %v720 = vmul.f32 %v705, 1.442695
        %v721 = vpow.pop %v720
        %v722 = vadd.f32 %v690, %v707
        %v723 = vadd.f32 %v691, %v709
        %v724 = vadd.f32 %v692, %v711
        %v725 = vadd.f32 %v693, %v713
        %v726 = vadd.f32 %v694, %v715
        %v727 = vadd.f32 %v695, %v717
        %v728 = vadd.f32 %v696, %v719
        %v729 = vadd.f32 %v697, %v721
        %v730 = vlog2.pop %v722
        %v731 = vmul.f32 %v730, 0.6931472
        %v732 = vlog2.pop %v723
        %v733 = vmul.f32 %v732, 0.6931472
        %v734 = vlog2.pop %v724
        %v735 = vmul.f32 %v734, 0.6931472
        %v736 = vlog2.pop %v725
        %v737 = vmul.f32 %v736, 0.6931472
        %v738 = vlog2.pop %v726
        %v739 = vmul.f32 %v738, 0.6931472
        %v740 = vlog2.pop %v727
        %v741 = vmul.f32 %v740, 0.6931472
        %v742 = vlog2.pop %v728
        %v743 = vmul.f32 %v742, 0.6931472
        %v744 = vlog2.pop %v729
        %v745 = vmul.f32 %v744, 0.6931472
        %v746 = vadd.f32 %v674, %v731
        %v747 = vadd.f32 %v675, %v733
        %v748 = vadd.f32 %v676, %v735
        %v749 = vadd.f32 %v677, %v737
        %v750 = vadd.f32 %v678, %v739
        %v751 = vadd.f32 %v679, %v741
        %v752 = vadd.f32 %v680, %v743
        %v753 = vadd.f32 %v681, %v745
        %v754 = vsub.f32 %v746, %v682
        %v755 = vsub.f32 %v747, %v683
        %v756 = vsub.f32 %v748, %v684
        %v757 = vsub.f32 %v749, %v685
        %v758 = vsub.f32 %v750, %v686
        %v759 = vsub.f32 %v751, %v687
        %v760 = vsub.f32 %v752, %v688
        %v761 = vsub.f32 %v753, %v689
        %762 = vst.msk [vmem:[%s219] sm:$0xff] %vm577, %v754
        %763 = vst.msk [vmem:[%s219 + $0x8] sm:$0xff] %vm577, %v755
        %764 = vst.msk [vmem:[%s219 + $0x10] sm:$0xff] %vm577, %v756
        %765 = vst.msk [vmem:[%s219 + $0x18] sm:$0xff] %vm577, %v757
        %766 = vst.msk [vmem:[%s219 + $0x20] sm:$0xff] %vm577, %v758
        %767 = vst.msk [vmem:[%s219 + $0x28] sm:$0xff] %vm577, %v759
        %768 = vst.msk [vmem:[%s219 + $0x30] sm:$0xff] %vm577, %v760
        %769 = vst.msk [vmem:[%s219 + $0x38] sm:$0xff] %vm577, %v761
      $region40: #{tpu_custom_call.1} parent=27 // pred_fallthru
        _
      %s770 = smul.u32 8, %s19
      %p771 = scmp.lt.s32.totalorder %s18, 1
      %s772 = scalar_select %p771, %s18, 1
      %p773 = scmp.lt.s32.totalorder %s770, 7
      %s774 = scalar_select %p773, %s770, 7
      %s775 = smul.addr %s772, 8
      %s776 = sadd.s32 %s774, %s775
      %s777 = smul.addr %s776, 8
      %s778 = scalar_lea.vmem %s2, %s777
      // Predicated region
      $region41: #{tpu_custom_call.1} parent=27 // pred_check
        %p779 = pneg %p108
      $region42: #{tpu_custom_call.1} parent=27 // pred_check_branch
        %781 = sbr.rel (%p779) target = $region44
      $region43: #{tpu_custom_call.1} parent=27 // pred_region
        %s782 = smul.u32 8, %s19
      $region44: #{tpu_custom_call.1} parent=27 // pred_fallthru
        _
    $region28: #{tpu_custom_call.1} parent=5 // pred_fallthru
      _
    %p783 = scmp.le.s32.totalorder 2, %s8
    // Predicated region
    $region45: #{tpu_custom_call.1} parent=5 // pred_check
      %p784 = pneg %p783
    $region46: #{tpu_custom_call.1} parent=5 // pred_check_branch
      %786 = sbr.rel (%p784) target = $region48
    $region47: #{tpu_custom_call.1} parent=5 // pred_region
      %s787 = ssub.s32 %s8, 2
      // Predicated region
      $region49: #{tpu_custom_call.1} parent=47 // pred_check
        %p788 = pneg %p114
      $region50: #{tpu_custom_call.1} parent=47 // pred_check_branch
        %790 = sbr.rel (%p788) target = $region52
      $region51: #{tpu_custom_call.1} parent=47 // pred_region
        %s791 = smul.u32 8, %s22
        %p792 = scmp.lt.s32.totalorder %s21, 1
        %s793 = scalar_select %p792, %s21, 1
        %p794 = scmp.lt.s32.totalorder %s791, 7
        %s795 = scalar_select %p794, %s791, 7
        %s796 = smul.addr %s793, 8
        %s797 = sadd.s32 %s795, %s796
        %s798 = smul.addr %s797, 8
        %s799 = scalar_lea.vmem %s2, %s798
      $region52: #{tpu_custom_call.1} parent=47 // pred_fallthru
        _
    $region48: #{tpu_custom_call.1} parent=5 // pred_fallthru
      _
  $region6: #{tpu_custom_call.1} parent=0 // loop_footer
    %s12 = sadd.s32 1, %s8
  $region7: #{tpu_custom_call.1} parent=0 // loop_footer_branch
    %7 = sbr.rel target = $region3
  $region8: #{tpu_custom_call.1} parent=0 // loop_exit
    _

</llo_original>
